<compile_context>
chip_gen: v7x
topology: tpu7x:2x2x1
jax: 0.10.0
libtpu: 0.0.40
codegen_flags: <defaults>
</compile_context>

<pallas_src>
import jax
import jax.numpy as jnp
from jax.experimental import pallas as pl
from jax.experimental.pallas import tpu as pltpu

_LANE = 128


def _mlp_kernel(x_ref,
                w1_ref, b1_ref,
                w2_ref, b2_ref,
                w3_ref, b3_ref,
                w4_ref, b4_ref,
                o_ref):
    # x tile [tb, 30] f32 -> bf16 for the MXU; accumulate in f32.
    x = x_ref[...].astype(jnp.bfloat16)

    # fc1 (no activation after it in the reference forward); K=30, Mosaic pads.
    h = jnp.dot(x, w1_ref[...], preferred_element_type=jnp.float32) + b1_ref[...]

    # fc2 -> sigmoid (tanh form: one EUP transcendental instead of exp+div)
    h = jnp.dot(h.astype(jnp.bfloat16), w2_ref[...],
                preferred_element_type=jnp.float32) + b2_ref[...]
    h = 0.5 * (jnp.tanh(0.5 * h) + 1.0)

    # fc3 -> sigmoid
    h = jnp.dot(h.astype(jnp.bfloat16), w3_ref[...],
                preferred_element_type=jnp.float32) + b3_ref[...]
    h = 0.5 * (jnp.tanh(0.5 * h) + 1.0)

    # fc4 -> softmax over the true output lanes (w4 is [128, 32]; padded rows
    # of w4 are zero so the padded hidden lanes contribute nothing).
    logits = jnp.dot(h.astype(jnp.bfloat16), w4_ref[...],
                     preferred_element_type=jnp.float32) + b4_ref[...]
    logits = logits - jnp.max(logits, axis=-1, keepdims=True)
    e = jnp.exp(logits)
    denom = jnp.sum(e, axis=-1, keepdims=True)
    o_ref[...] = (e / denom).astype(o_ref.dtype)   # exact normalization


def _round_up(n, m):
    return (n + m - 1) // m * m


def classification_net(x, params, *, block_b=2048):
    """x: [B, 30] float32. params: dict of (w, b) per layer, w stored as [in, out]."""
    B, in_features = x.shape
    H = params["b4"].shape[-1]                      # true hidden / output width
    h_p = _round_up(max(H, _LANE), _LANE)           # hidden padded to 128 lanes

    def pad_cols(a, cols, dt):
        return jnp.pad(a, ((0, 0), (0, cols - a.shape[1]))).astype(dt)

    # Weights bf16 for the MXU.  Hidden (inner) dims padded to 128 so the
    # middle matmuls are lane-native; fc1 keeps K=30, fc4 keeps N=H.
    w1 = pad_cols(params["w1"], h_p, jnp.bfloat16)                     # (30, 128)
    b1 = pad_cols(params["b1"], h_p, jnp.float32)                      # (1, 128)
    w2 = jnp.pad(params["w2"], ((0, h_p - H), (0, h_p - H))).astype(jnp.bfloat16)
    b2 = pad_cols(params["b2"], h_p, jnp.float32)
    w3 = jnp.pad(params["w3"], ((0, h_p - H), (0, h_p - H))).astype(jnp.bfloat16)
    b3 = pad_cols(params["b3"], h_p, jnp.float32)
    w4 = jnp.pad(params["w4"], ((0, h_p - H), (0, 0))).astype(jnp.bfloat16)  # (128, H)
    b4 = params["b4"].astype(jnp.float32)                              # (1, H)

    # Batch tiling: stream x / out tiles, keep the (tiny) weights VMEM-resident.
    b_ru = _round_up(B, 8)
    tb = min(_round_up(block_b, 8), b_ru)
    if b_ru >= 16:
        # Keep >= 2 grid steps when the batch allows so the "parallel" axis can
        # be split across both TensorCores on v7x.
        tb = min(tb, _round_up(pl.cdiv(b_ru, 2), 8))
    b_pad = _round_up(B, tb)

    x = x.astype(jnp.float32)
    if b_pad != B:
        x = jnp.pad(x, ((0, b_pad - B), (0, 0)))    # rows only; lanes stay at 30

    grid = (b_pad // tb,)
    x_spec = pl.BlockSpec((tb, in_features), lambda i: (i, 0))
    out_spec = pl.BlockSpec((tb, H), lambda i: (i, 0))

    def resident(arr):  # full-array block, same tile for every grid step
        return pl.BlockSpec(arr.shape, lambda i: (0, 0))

    out = pl.pallas_call(
        _mlp_kernel,
        out_shape=jax.ShapeDtypeStruct((b_pad, H), jnp.float32),
        grid=grid,
        in_specs=[x_spec,
                  resident(w1), resident(b1),
                  resident(w2), resident(b2),
                  resident(w3), resident(b3),
                  resident(w4), resident(b4)],
        out_specs=out_spec,
        compiler_params=pltpu.CompilerParams(
            dimension_semantics=("parallel",),
            vmem_limit_bytes=32 * 1024 * 1024),
    )(x, w1, b1, w2, b2, w3, b3, w4, b4)

    return out[:B] if b_pad != B else out


def init_params(key, n_hidden_neurons, in_features=30):
    """Deterministic init mimicking torch.nn.Linear's uniform(-1/sqrt(fan_in), ...).
    Weights stored transposed as [in, out]; biases as [1, out]."""
    dims = [(in_features, n_hidden_neurons),
            (n_hidden_neurons, n_hidden_neurons),
            (n_hidden_neurons, n_hidden_neurons),
            (n_hidden_neurons, n_hidden_neurons)]
    params = {}
    for i, (fan_in, fan_out) in enumerate(dims, start=1):
        key, kw, kb = jax.random.split(key, 3)
        bound = 1.0 / jnp.sqrt(jnp.float32(fan_in))
        params[f"w{i}"] = jax.random.uniform(
            kw, (fan_in, fan_out), jnp.float32, minval=-bound, maxval=bound)
        params[f"b{i}"] = jax.random.uniform(
            kb, (1, fan_out), jnp.float32, minval=-bound, maxval=bound)
    return params


def _reference(x, p):
    h = x @ p["w1"] + p["b1"]
    h = jax.nn.sigmoid(h @ p["w2"] + p["b2"])
    h = jax.nn.sigmoid(h @ p["w3"] + p["b3"])
    return jax.nn.softmax(h @ p["w4"] + p["b4"], axis=-1)


if __name__ == "__main__":
    key = jax.random.PRNGKey(0)
    k_x, k_p = jax.random.split(key)

    B, IN, HID = 8, 30, 32
    x = jax.random.normal(k_x, (B, IN), dtype=jnp.float32)
    params = init_params(k_p, HID, IN)

    out = jax.block_until_ready(classification_net(x, params))

    expected = _reference(x, params)

    assert out.shape == (B, HID)
    # exact normalization -> rows sum to 1 (f32 rounding only)
    assert jnp.allclose(jnp.sum(out, axis=1), 1.0, atol=1e-3)
    # matches the f32 reference within bf16-MXU tolerance
    assert jnp.allclose(out, expected, atol=2e-2)

    print("KERNEL_OK")
</pallas_src>

<mosaic_0001>
module attributes {stable_mosaic.version = 11 : i64} {
  func.func @_mlp_kernel(%arg0: i32, %arg1: memref<8x30xf32, #tpu.memory_space<vmem>>, %arg2: memref<30x128xbf16, #tpu.memory_space<vmem>>, %arg3: memref<1x128xf32, #tpu.memory_space<vmem>>, %arg4: memref<128x128xbf16, #tpu.memory_space<vmem>>, %arg5: memref<1x128xf32, #tpu.memory_space<vmem>>, %arg6: memref<128x128xbf16, #tpu.memory_space<vmem>>, %arg7: memref<1x128xf32, #tpu.memory_space<vmem>>, %arg8: memref<128x32xbf16, #tpu.memory_space<vmem>>, %arg9: memref<1x32xf32, #tpu.memory_space<vmem>>, %arg10: memref<8x32xf32, #tpu.memory_space<vmem>>) attributes {dimension_semantics = [#tpu.dimension_semantics<parallel>], iteration_bounds = array<i64: 1>, scalar_prefetch = 0 : i64, scratch_operands = 0 : i64, tpu.core_type = #tpu.core_type<tc>, window_params = [{transform_indices = @transform_0, window_bounds = array<i64: 8, 30>}, {pipeline_mode = #tpu.pipeline_mode<synchronous>, transform_indices = @transform_1, window_bounds = array<i64: 30, 128>}, {pipeline_mode = #tpu.pipeline_mode<synchronous>, transform_indices = @transform_2, window_bounds = array<i64: 1, 128>}, {pipeline_mode = #tpu.pipeline_mode<synchronous>, transform_indices = @transform_3, window_bounds = array<i64: 128, 128>}, {pipeline_mode = #tpu.pipeline_mode<synchronous>, transform_indices = @transform_4, window_bounds = array<i64: 1, 128>}, {pipeline_mode = #tpu.pipeline_mode<synchronous>, transform_indices = @transform_5, window_bounds = array<i64: 128, 128>}, {pipeline_mode = #tpu.pipeline_mode<synchronous>, transform_indices = @transform_6, window_bounds = array<i64: 1, 128>}, {pipeline_mode = #tpu.pipeline_mode<synchronous>, transform_indices = @transform_7, window_bounds = array<i64: 128, 32>}, {pipeline_mode = #tpu.pipeline_mode<synchronous>, transform_indices = @transform_8, window_bounds = array<i64: 1, 32>}, {transform_indices = @transform_9, window_bounds = array<i64: 8, 32>}]} {
    %c0 = arith.constant 0 : index
    %c0_0 = arith.constant 0 : index
    %0 = vector.load %arg1[%c0, %c0_0] : memref<8x30xf32, #tpu.memory_space<vmem>>, vector<8x30xf32>
    %1 = arith.truncf %0 : vector<8x30xf32> to vector<8x30xbf16>
    %c0_1 = arith.constant 0 : index
    %c0_2 = arith.constant 0 : index
    %2 = vector.load %arg2[%c0_1, %c0_2] : memref<30x128xbf16, #tpu.memory_space<vmem>>, vector<30x128xbf16>
    %cst = arith.constant dense<0.000000e+00> : vector<8x128xf32>
    %3 = tpu.matmul %1, %2, %cst {dimension_numbers = #tpu.dot_dimension_numbers<[1], [0], [0], [1], [0, 0, 1, 1], [], []>} : vector<8x30xbf16>, vector<30x128xbf16>, vector<8x128xf32> -> vector<8x128xf32>
    %c0_3 = arith.constant 0 : index
    %c0_4 = arith.constant 0 : index
    %4 = vector.load %arg3[%c0_3, %c0_4] : memref<1x128xf32, #tpu.memory_space<vmem>>, vector<1x128xf32>
    %5 = vector.broadcast %4 : vector<1x128xf32> to vector<8x128xf32>
    %6 = arith.addf %3, %5 : vector<8x128xf32>
    %7 = arith.truncf %6 : vector<8x128xf32> to vector<8x128xbf16>
    %c0_5 = arith.constant 0 : index
    %c0_6 = arith.constant 0 : index
    %8 = vector.load %arg4[%c0_5, %c0_6] : memref<128x128xbf16, #tpu.memory_space<vmem>>, vector<128x128xbf16>
    %cst_7 = arith.constant dense<0.000000e+00> : vector<8x128xf32>
    %9 = tpu.matmul %7, %8, %cst_7 {dimension_numbers = #tpu.dot_dimension_numbers<[1], [0], [0], [1], [0, 0, 1, 1], [], []>} : vector<8x128xbf16>, vector<128x128xbf16>, vector<8x128xf32> -> vector<8x128xf32>
    %c0_8 = arith.constant 0 : index
    %c0_9 = arith.constant 0 : index
    %10 = vector.load %arg5[%c0_8, %c0_9] : memref<1x128xf32, #tpu.memory_space<vmem>>, vector<1x128xf32>
    %11 = vector.broadcast %10 : vector<1x128xf32> to vector<8x128xf32>
    %12 = arith.addf %9, %11 : vector<8x128xf32>
    %cst_10 = arith.constant 5.000000e-01 : f32
    %13 = vector.broadcast %cst_10 : f32 to vector<8x128xf32>
    %14 = arith.mulf %13, %12 : vector<8x128xf32>
    %15 = math.tanh %14 : vector<8x128xf32>
    %cst_11 = arith.constant 1.000000e+00 : f32
    %16 = vector.broadcast %cst_11 : f32 to vector<8x128xf32>
    %17 = arith.addf %15, %16 : vector<8x128xf32>
    %cst_12 = arith.constant 5.000000e-01 : f32
    %18 = vector.broadcast %cst_12 : f32 to vector<8x128xf32>
    %19 = arith.mulf %18, %17 : vector<8x128xf32>
    %20 = arith.truncf %19 : vector<8x128xf32> to vector<8x128xbf16>
    %c0_13 = arith.constant 0 : index
    %c0_14 = arith.constant 0 : index
    %21 = vector.load %arg6[%c0_13, %c0_14] : memref<128x128xbf16, #tpu.memory_space<vmem>>, vector<128x128xbf16>
    %cst_15 = arith.constant dense<0.000000e+00> : vector<8x128xf32>
    %22 = tpu.matmul %20, %21, %cst_15 {dimension_numbers = #tpu.dot_dimension_numbers<[1], [0], [0], [1], [0, 0, 1, 1], [], []>} : vector<8x128xbf16>, vector<128x128xbf16>, vector<8x128xf32> -> vector<8x128xf32>
    %c0_16 = arith.constant 0 : index
    %c0_17 = arith.constant 0 : index
    %23 = vector.load %arg7[%c0_16, %c0_17] : memref<1x128xf32, #tpu.memory_space<vmem>>, vector<1x128xf32>
    %24 = vector.broadcast %23 : vector<1x128xf32> to vector<8x128xf32>
    %25 = arith.addf %22, %24 : vector<8x128xf32>
    %cst_18 = arith.constant 5.000000e-01 : f32
    %26 = vector.broadcast %cst_18 : f32 to vector<8x128xf32>
    %27 = arith.mulf %26, %25 : vector<8x128xf32>
    %28 = math.tanh %27 : vector<8x128xf32>
    %cst_19 = arith.constant 1.000000e+00 : f32
    %29 = vector.broadcast %cst_19 : f32 to vector<8x128xf32>
    %30 = arith.addf %28, %29 : vector<8x128xf32>
    %cst_20 = arith.constant 5.000000e-01 : f32
    %31 = vector.broadcast %cst_20 : f32 to vector<8x128xf32>
    %32 = arith.mulf %31, %30 : vector<8x128xf32>
    %33 = arith.truncf %32 : vector<8x128xf32> to vector<8x128xbf16>
    %c0_21 = arith.constant 0 : index
    %c0_22 = arith.constant 0 : index
    %34 = vector.load %arg8[%c0_21, %c0_22] : memref<128x32xbf16, #tpu.memory_space<vmem>>, vector<128x32xbf16>
    %cst_23 = arith.constant dense<0.000000e+00> : vector<8x32xf32>
    %35 = tpu.matmul %33, %34, %cst_23 {dimension_numbers = #tpu.dot_dimension_numbers<[1], [0], [0], [1], [0, 0, 1, 1], [], []>} : vector<8x128xbf16>, vector<128x32xbf16>, vector<8x32xf32> -> vector<8x32xf32>
    %c0_24 = arith.constant 0 : index
    %c0_25 = arith.constant 0 : index
    %36 = vector.load %arg9[%c0_24, %c0_25] : memref<1x32xf32, #tpu.memory_space<vmem>>, vector<1x32xf32>
    %37 = vector.broadcast %36 : vector<1x32xf32> to vector<8x32xf32>
    %38 = arith.addf %35, %37 : vector<8x32xf32>
    %cst_26 = arith.constant dense<0xFF800000> : vector<8xf32>
    %39 = vector.multi_reduction <maximumf>, %38, %cst_26 [1] : vector<8x32xf32> to vector<8xf32>
    %40 = vector.shape_cast %39 : vector<8xf32> to vector<8x1xf32>
    %41 = vector.broadcast %40 : vector<8x1xf32> to vector<8x32xf32>
    %42 = arith.subf %38, %41 : vector<8x32xf32>
    %43 = math.exp %42 : vector<8x32xf32>
    %cst_27 = arith.constant dense<0.000000e+00> : vector<8xf32>
    %44 = vector.multi_reduction <add>, %43, %cst_27 [1] : vector<8x32xf32> to vector<8xf32>
    %45 = vector.shape_cast %44 : vector<8xf32> to vector<8x1xf32>
    %46 = vector.broadcast %45 : vector<8x1xf32> to vector<8x32xf32>
    %47 = arith.divf %43, %46 : vector<8x32xf32>
    %c0_28 = arith.constant 0 : index
    %c0_29 = arith.constant 0 : index
    %48 = vector.load %arg10[%c0_28, %c0_29] : memref<8x32xf32, #tpu.memory_space<vmem>>, vector<8x32xf32>
    tpu.vector_store %arg10[%c0_28, %c0_29], %47 {strides = array<i32>} : memref<8x32xf32, #tpu.memory_space<vmem>>, vector<8x32xf32>,
    return
  }
  func.func @transform_0(%arg0: i32) -> (i32, i32) {
    %c0_i32 = arith.constant 0 : i32
    %c0_i32_0 = arith.constant 0 : i32
    return %arg0, %c0_i32 : i32, i32
  }
  func.func @transform_1(%arg0: i32) -> (i32, i32) {
    %c0_i32 = arith.constant 0 : i32
    %c0_i32_0 = arith.constant 0 : i32
    %c0_i32_1 = arith.constant 0 : i32
    return %c0_i32, %c0_i32_0 : i32, i32
  }
  func.func @transform_2(%arg0: i32) -> (i32, i32) {
    %c0_i32 = arith.constant 0 : i32
    %c0_i32_0 = arith.constant 0 : i32
    %c0_i32_1 = arith.constant 0 : i32
    return %c0_i32, %c0_i32_0 : i32, i32
  }
  func.func @transform_3(%arg0: i32) -> (i32, i32) {
    %c0_i32 = arith.constant 0 : i32
    %c0_i32_0 = arith.constant 0 : i32
    %c0_i32_1 = arith.constant 0 : i32
    return %c0_i32, %c0_i32_0 : i32, i32
  }
  func.func @transform_4(%arg0: i32) -> (i32, i32) {
    %c0_i32 = arith.constant 0 : i32
    %c0_i32_0 = arith.constant 0 : i32
    %c0_i32_1 = arith.constant 0 : i32
    return %c0_i32, %c0_i32_0 : i32, i32
  }
  func.func @transform_5(%arg0: i32) -> (i32, i32) {
    %c0_i32 = arith.constant 0 : i32
    %c0_i32_0 = arith.constant 0 : i32
    %c0_i32_1 = arith.constant 0 : i32
    return %c0_i32, %c0_i32_0 : i32, i32
  }
  func.func @transform_6(%arg0: i32) -> (i32, i32) {
    %c0_i32 = arith.constant 0 : i32
    %c0_i32_0 = arith.constant 0 : i32
    %c0_i32_1 = arith.constant 0 : i32
    return %c0_i32, %c0_i32_0 : i32, i32
  }
  func.func @transform_7(%arg0: i32) -> (i32, i32) {
    %c0_i32 = arith.constant 0 : i32
    %c0_i32_0 = arith.constant 0 : i32
    %c0_i32_1 = arith.constant 0 : i32
    return %c0_i32, %c0_i32_0 : i32, i32
  }
  func.func @transform_8(%arg0: i32) -> (i32, i32) {
    %c0_i32 = arith.constant 0 : i32
    %c0_i32_0 = arith.constant 0 : i32
    %c0_i32_1 = arith.constant 0 : i32
    return %c0_i32, %c0_i32_0 : i32, i32
  }
  func.func @transform_9(%arg0: i32) -> (i32, i32) {
    %c0_i32 = arith.constant 0 : i32
    %c0_i32_0 = arith.constant 0 : i32
    return %arg0, %c0_i32 : i32, i32
  }
}

</mosaic_0001>

<llo_original>
// kernel: tpu_custom_call.1
$region0: #{tpu_custom_call.1}
  #allocation0 [shape = 'u32[]', space=smem, size = 0x4, offset = 0x4, fixed_abs, tag = 'smem constant byte address 0x4 - core index']
  #allocation1 [shape = 'u32[144,128]{1,0:T(1,128)}', space=vmem, size = 0x12000, scoped, tag = 'internal scratch']
  %s0 = inlined_call_operand.vmem [shape: f32[8,30], index: 0, kind: input, shape index: {}]
  %s1 = inlined_call_operand.vmem [shape: bf16[30,128], index: 1, kind: input, shape index: {}]
  %s2 = inlined_call_operand.vmem [shape: f32[1,128], index: 2, kind: input, shape index: {}]
  %s3 = inlined_call_operand.vmem [shape: bf16[128,128], index: 3, kind: input, shape index: {}]
  %s4 = inlined_call_operand.vmem [shape: f32[1,128], index: 4, kind: input, shape index: {}]
  %s5 = inlined_call_operand.hbm [shape: bf16[128,128], index: 5, kind: input, shape index: {}]
  %s6 = inlined_call_operand.hbm [shape: f32[1,128], index: 6, kind: input, shape index: {}]
  %s7 = inlined_call_operand.vmem [shape: bf16[128,32], index: 7, kind: input, shape index: {}]
  %s8 = inlined_call_operand.vmem [shape: f32[1,32], index: 8, kind: input, shape index: {}]
  %s9 = inlined_call_operand.hbm [shape: f32[8,32], index: 9, kind: output, shape index: {}]
  %s10 = sld [smem:[#allocation0]]
  $region54: #{tpu_custom_call.1} parent=0
    _
  %s12 = ssub.s32 1, %s10
  %s13 = scalar_select 0, %s12, %s10
  $region1: #{tpu_custom_call.1} parent=0
    #allocation2 [shape = 'u8[32768]{0}', space=vmem, size = 0x8000, scoped, tag = 'input window, operand 5, single buffered']
    #allocation3 [shape = 's32[1]{0}', space=sflag, size = 0x4, scoped, tag = 'scoped memory for tpu_custom_call.1']
    #allocation4 [shape = 's32[1]{0}', space=sflag, size = 0x4, scoped, tag = 'scoped memory for tpu_custom_call.1']
    #allocation5 [shape = 'u8[512]{0}', space=vmem, size = 0x400, scoped, tag = 'input window, operand 6, single buffered']
    #allocation6 [shape = 's32[1]{0}', space=sflag, size = 0x4, scoped, tag = 'scoped memory for tpu_custom_call.1']
    #allocation7 [shape = 'u8[4096]{0}', space=vmem, size = 0x1000, scoped, tag = 'output window, operand 0, single buffered']
    %14 = vsyncpa [#allocation3], 0
    %15 = vsyncpa [#allocation6], 0
    %16 = vsyncpa [#allocation4], 0
    // Predicated region
    $region2: #{tpu_custom_call.1} parent=1 // pred_check
      _
    $region3: #{tpu_custom_call.1} parent=1 // pred_check_branch
      %18 = sbr.rel (0) target = $region5
    $region4: #{tpu_custom_call.1} parent=1 // pred_region
      _
    $region5: #{tpu_custom_call.1} parent=1 // pred_fallthru
      _
    // Predicated region
    $region6: #{tpu_custom_call.1} parent=1 // pred_check
      _
    $region7: #{tpu_custom_call.1} parent=1 // pred_check_branch
      %20 = sbr.rel (0) target = $region9
    $region8: #{tpu_custom_call.1} parent=1 // pred_region
      _
    $region9: #{tpu_custom_call.1} parent=1 // pred_fallthru
      _
    // Predicated region
    $region10: #{tpu_custom_call.1} parent=1 // pred_check
      _
    $region11: #{tpu_custom_call.1} parent=1 // pred_check_branch
      %22 = sbr.rel (0) target = $region13
    $region12: #{tpu_custom_call.1} parent=1 // pred_region
      _
    $region13: #{tpu_custom_call.1} parent=1 // pred_fallthru
      _
    // Predicated region
    $region14: #{tpu_custom_call.1} parent=1 // pred_check
      _
    $region15: #{tpu_custom_call.1} parent=1 // pred_check_branch
      %24 = sbr.rel (0) target = $region17
    $region16: #{tpu_custom_call.1} parent=1 // pred_region
      _
    $region17: #{tpu_custom_call.1} parent=1 // pred_fallthru
      _
    // Predicated region
    $region18: #{tpu_custom_call.1} parent=1 // pred_check
      _
    $region19: #{tpu_custom_call.1} parent=1 // pred_check_branch
      %26 = sbr.rel (0) target = $region21
    $region20: #{tpu_custom_call.1} parent=1 // pred_region
      _
    $region21: #{tpu_custom_call.1} parent=1 // pred_fallthru
      _
    // Predicated region
    $region22: #{tpu_custom_call.1} parent=1 // pred_check
      _
    $region23: #{tpu_custom_call.1} parent=1 // pred_check_branch
      %28 = sbr.rel (0) target = $region25
    $region24: #{tpu_custom_call.1} parent=1 // pred_region
      %s30 = ssub.s32 1024, 1024
      %31 = vsyncadd [#allocation3], %s30
      %s32 = sshll.u32 [#allocation2], 4
      %s33 = int_to_ptr.vmem [resolvable:$true] %s32
      %38 = dma.hbm_to_vmem [thread:$0]  %s5, 1024, %s33, [#allocation3], 64, 64, 4
    $region25: #{tpu_custom_call.1} parent=1 // pred_fallthru
      _
    // Predicated region
    $region26: #{tpu_custom_call.1} parent=1 // pred_check
      _
    $region27: #{tpu_custom_call.1} parent=1 // pred_check_branch
      %40 = sbr.rel (0) target = $region29
    $region28: #{tpu_custom_call.1} parent=1 // pred_region
      %s42 = ssub.s32 16, 16
      %43 = vsyncadd [#allocation6], %s42
      %s45 = sshll.u32 [#allocation5], 4
      %s46 = int_to_ptr.vmem [resolvable:$true] %s45
      %48 = dma.hbm_to_vmem [thread:$0]  %s6, 16, %s46, [#allocation6]
    $region29: #{tpu_custom_call.1} parent=1 // pred_fallthru
      _
    // Predicated region
    $region30: #{tpu_custom_call.1} parent=1 // pred_check
      _
    $region31: #{tpu_custom_call.1} parent=1 // pred_check_branch
      %50 = sbr.rel (0) target = $region33
    $region32: #{tpu_custom_call.1} parent=1 // pred_region
      _
    $region33: #{tpu_custom_call.1} parent=1 // pred_fallthru
      _
    // Predicated region
    $region34: #{tpu_custom_call.1} parent=1 // pred_check
      _
    $region35: #{tpu_custom_call.1} parent=1 // pred_check_branch
      %52 = sbr.rel (0) target = $region37
    $region36: #{tpu_custom_call.1} parent=1 // pred_region
      _
    $region37: #{tpu_custom_call.1} parent=1 // pred_fallthru
      _
    // Predicated region
    $region38: #{tpu_custom_call.1} parent=1 // pred_check
      _
    $region39: #{tpu_custom_call.1} parent=1 // pred_check_branch
      %54 = sbr.rel (0) target = $region41
    $region40: #{tpu_custom_call.1} parent=1 // pred_region
      %55 = dma.done [#allocation3], 1024
    $region41: #{tpu_custom_call.1} parent=1 // pred_fallthru
      _
    // Predicated region
    $region42: #{tpu_custom_call.1} parent=1 // pred_check
      _
    $region43: #{tpu_custom_call.1} parent=1 // pred_check_branch
      %57 = sbr.rel (0) target = $region45
    $region44: #{tpu_custom_call.1} parent=1 // pred_region
      %58 = dma.done [#allocation6], 16
    $region45: #{tpu_custom_call.1} parent=1 // pred_fallthru
      _
    %v60 = vld [vmem:[%s0] sm:$0xff]
    %v61 = vpack.c.bf16 %v60, %v60
    %v62 = vld [vmem:[%s1] sm:$0xf]
    %v63 = vld [vmem:[%s1 + $0x4] sm:$0xf]
    %v64 = vld [vmem:[%s1 + $0x8] sm:$0xf]
    %v65 = vld [vmem:[%s1 + $0xc] sm:$0x7]
    %v66 = vld [vmem:[%s2] sm:$0x1]
    %v68 = vlaneseq
    %v69 = vshrl.u32 %v68, 7
    %v70 = vsub.s32 0, %v69
    %v71 = vrot.slane %v66, %v70
    %v77 = vunpack.c.l.b16 %v62
    %v78 = vunpack.c.l.b16 %v63
    %v79 = vunpack.c.l.b16 %v64
    %v80 = vunpack.c.l.b16 %v65
    %v81 = vpack.c.b16 %v78, %v77
    %v82 = vpack.c.b16 %v80, %v79
    %vm84 = vcmask 244736
    %v86 = vsel %vm84, %v61, 0
    %vm88 = vcmask 1046528
    %v90 = vsel %vm88, %v82, 0
    %92 = vmatprep.subr.bf16.mxu0 0
    %93 = vmatpush1.bf16.msra.mxu0 %v81
    %94 = vmatprep.subr.bf16.mxu0 0
    %95 = vmatpush1.bf16.msra.mxu0 %v90
    %96 = vmatprep.subr.bf16.mxu0 0
    %97 = vmatpush1.bf16.msra.mxu0 0
    %98 = vmatprep.subr.bf16.mxu0 0
    %99 = vmatpush1.bf16.msra.mxu0 0
    %100 = vmatprep.subr.bf16.mxu0 0
    %101 = vmatpush1.bf16.msra.mxu0 0
    %102 = vmatprep.subr.bf16.mxu0 0
    %103 = vmatpush1.bf16.msra.mxu0 0
    %104 = vmatprep.subr.bf16.mxu0 0
    %105 = vmatpush1.bf16.msra.mxu0 0
    %106 = vmatprep.subr.bf16.mxu0 0
    %107 = vmatpush1.bf16.msra.mxu0 0
    %108 = vmatprep.subr.bf16.mxu0 0
    %109 = vmatpush1.bf16.msra.mxu0 0
    %110 = vmatprep.subr.bf16.mxu0 0
    %111 = vmatpush1.bf16.msra.mxu0 0
    %112 = vmatprep.subr.bf16.mxu0 0
    %113 = vmatpush1.bf16.msra.mxu0 0
    %114 = vmatprep.subr.bf16.mxu0 0
    %115 = vmatpush1.bf16.msra.mxu0 0
    %116 = vmatprep.subr.bf16.mxu0 0
    %117 = vmatpush1.bf16.msra.mxu0 0
    %118 = vmatprep.subr.bf16.mxu0 0
    %119 = vmatpush1.bf16.msra.mxu0 0
    %120 = vmatprep.subr.bf16.mxu0 0
    %121 = vmatpush1.bf16.msra.mxu0 0
    %122 = vmatprep.subr.bf16.mxu0 0
    %123 = vmatpush1.bf16.msra.mxu0 0
    %124 = vmatprep.mubr.bf16.mxu0 0
    %125 = vmatmul.mubr.bf16.gmra.mrb[0].mxu0 %v86
    %v126 = vpop.f32.mrb[0].mxu0
    %v127 = vadd.f32 %v71, %v126
    %v128 = vpop.f32.mrb[0].mxu0
    %v129 = vpop.f32.mrb[0].mxu0
    %v130 = vpop.f32.mrb[0].mxu0
    %131 = vdwg.mxu0
    %v132 = vpack.c.bf16 %v127, %v127
    %v133 = vld [vmem:[%s3] sm:$0xf]
    %v134 = vld [vmem:[%s3 + $0x4] sm:$0xf]
    %v135 = vld [vmem:[%s3 + $0x8] sm:$0xf]
    %v136 = vld [vmem:[%s3 + $0xc] sm:$0xf]
    %v137 = vld [vmem:[%s3 + $0x10] sm:$0xf]
    %v138 = vld [vmem:[%s3 + $0x14] sm:$0xf]
    %v139 = vld [vmem:[%s3 + $0x18] sm:$0xf]
    %v140 = vld [vmem:[%s3 + $0x1c] sm:$0xf]
    %v141 = vld [vmem:[%s3 + $0x20] sm:$0xf]
    %v142 = vld [vmem:[%s3 + $0x24] sm:$0xf]
    %v143 = vld [vmem:[%s3 + $0x28] sm:$0xf]
    %v144 = vld [vmem:[%s3 + $0x2c] sm:$0xf]
    %v145 = vld [vmem:[%s3 + $0x30] sm:$0xf]
    %v146 = vld [vmem:[%s3 + $0x34] sm:$0xf]
    %v147 = vld [vmem:[%s3 + $0x38] sm:$0xf]
    %v148 = vld [vmem:[%s3 + $0x3c] sm:$0xf]
    %v149 = vld [vmem:[%s4] sm:$0x1]
    %v151 = vlaneseq
    %v152 = vshrl.u32 %v151, 7
    %v153 = vsub.s32 0, %v152
    %v154 = vrot.slane %v149, %v153
    %v172 = vunpack.c.l.b16 %v133
    %v173 = vunpack.c.l.b16 %v134
    %v174 = vunpack.c.l.b16 %v135
    %v175 = vunpack.c.l.b16 %v136
    %v176 = vunpack.c.l.b16 %v137
    %v177 = vunpack.c.l.b16 %v138
    %v178 = vunpack.c.l.b16 %v139
    %v179 = vunpack.c.l.b16 %v140
    %v180 = vunpack.c.l.b16 %v141
    %v181 = vunpack.c.l.b16 %v142
    %v182 = vunpack.c.l.b16 %v143
    %v183 = vunpack.c.l.b16 %v144
    %v184 = vunpack.c.l.b16 %v145
    %v185 = vunpack.c.l.b16 %v146
    %v186 = vunpack.c.l.b16 %v147
    %v187 = vunpack.c.l.b16 %v148
    %v188 = vpack.c.b16 %v173, %v172
    %v189 = vpack.c.b16 %v175, %v174
    %v190 = vpack.c.b16 %v177, %v176
    %v191 = vpack.c.b16 %v179, %v178
    %v192 = vpack.c.b16 %v181, %v180
    %v193 = vpack.c.b16 %v183, %v182
    %v194 = vpack.c.b16 %v185, %v184
    %v195 = vpack.c.b16 %v187, %v186
    %204 = vmatprep.subr.bf16.mxu0 0
    %205 = vmatpush1.bf16.msra.mxu0 %v188
    %206 = vmatprep.subr.bf16.mxu0 0
    %207 = vmatpush1.bf16.msra.mxu0 %v189
    %208 = vmatprep.subr.bf16.mxu0 0
    %209 = vmatpush1.bf16.msra.mxu0 %v190
    %210 = vmatprep.subr.bf16.mxu0 0
    %211 = vmatpush1.bf16.msra.mxu0 %v191
    %212 = vmatprep.subr.bf16.mxu0 0
    %213 = vmatpush1.bf16.msra.mxu0 %v192
    %214 = vmatprep.subr.bf16.mxu0 0
    %215 = vmatpush1.bf16.msra.mxu0 %v193
    %216 = vmatprep.subr.bf16.mxu0 0
    %217 = vmatpush1.bf16.msra.mxu0 %v194
    %218 = vmatprep.subr.bf16.mxu0 0
    %219 = vmatpush1.bf16.msra.mxu0 %v195
    %220 = vmatprep.subr.bf16.mxu0 0
    %221 = vmatpush1.bf16.msra.mxu0 0
    %222 = vmatprep.subr.bf16.mxu0 0
    %223 = vmatpush1.bf16.msra.mxu0 0
    %224 = vmatprep.subr.bf16.mxu0 0
    %225 = vmatpush1.bf16.msra.mxu0 0
    %226 = vmatprep.subr.bf16.mxu0 0
    %227 = vmatpush1.bf16.msra.mxu0 0
    %228 = vmatprep.subr.bf16.mxu0 0
    %229 = vmatpush1.bf16.msra.mxu0 0
    %230 = vmatprep.subr.bf16.mxu0 0
    %231 = vmatpush1.bf16.msra.mxu0 0
    %232 = vmatprep.subr.bf16.mxu0 0
    %233 = vmatpush1.bf16.msra.mxu0 0
    %234 = vmatprep.subr.bf16.mxu0 0
    %235 = vmatpush1.bf16.msra.mxu0 0
    %236 = vmatprep.mubr.bf16.mxu0 0
    %237 = vmatmul.mubr.bf16.gmra.mrb[0].mxu0 %v132
    %v238 = vpop.f32.mrb[0].mxu0
    %v239 = vadd.f32 %v154, %v238
    %v240 = vpop.f32.mrb[0].mxu0
    %v241 = vpop.f32.mrb[0].mxu0
    %v242 = vpop.f32.mrb[0].mxu0
    %243 = vdwg.mxu0
    %v244 = vmul.f32 %v239, 0.5
    %v245 = vtanh.pop %v244
    %v246 = vadd.f32 %v245, 1.0
    %v247 = vmul.f32 %v246, 0.5
    %v248 = vpack.c.bf16 %v247, %v247
    %v249 = vld [vmem:[#allocation2] sm:$0xf]
    %v250 = vld [vmem:[#allocation2 + $0x4] sm:$0xf]
    %v251 = vld [vmem:[#allocation2 + $0x8] sm:$0xf]
    %v252 = vld [vmem:[#allocation2 + $0xc] sm:$0xf]
    %v253 = vld [vmem:[#allocation2 + $0x10] sm:$0xf]
    %v254 = vld [vmem:[#allocation2 + $0x14] sm:$0xf]
    %v255 = vld [vmem:[#allocation2 + $0x18] sm:$0xf]
    %v256 = vld [vmem:[#allocation2 + $0x1c] sm:$0xf]
    %v257 = vld [vmem:[#allocation2 + $0x20] sm:$0xf]
    %v258 = vld [vmem:[#allocation2 + $0x24] sm:$0xf]
    %v259 = vld [vmem:[#allocation2 + $0x28] sm:$0xf]
    %v260 = vld [vmem:[#allocation2 + $0x2c] sm:$0xf]
    %v261 = vld [vmem:[#allocation2 + $0x30] sm:$0xf]
    %v262 = vld [vmem:[#allocation2 + $0x34] sm:$0xf]
    %v263 = vld [vmem:[#allocation2 + $0x38] sm:$0xf]
    %v264 = vld [vmem:[#allocation2 + $0x3c] sm:$0xf]
    %v265 = vld [vmem:[#allocation5] sm:$0x1]
    %v267 = vlaneseq
    %v268 = vshrl.u32 %v267, 7
    %v269 = vsub.s32 0, %v268
    %v270 = vrot.slane %v265, %v269
    %v288 = vunpack.c.l.b16 %v249
    %v289 = vunpack.c.l.b16 %v250
    %v290 = vunpack.c.l.b16 %v251
    %v291 = vunpack.c.l.b16 %v252
    %v292 = vunpack.c.l.b16 %v253
    %v293 = vunpack.c.l.b16 %v254
    %v294 = vunpack.c.l.b16 %v255
    %v295 = vunpack.c.l.b16 %v256
    %v296 = vunpack.c.l.b16 %v257
    %v297 = vunpack.c.l.b16 %v258
    %v298 = vunpack.c.l.b16 %v259
    %v299 = vunpack.c.l.b16 %v260
    %v300 = vunpack.c.l.b16 %v261
    %v301 = vunpack.c.l.b16 %v262
    %v302 = vunpack.c.l.b16 %v263
    %v303 = vunpack.c.l.b16 %v264
    %v304 = vpack.c.b16 %v289, %v288
    %v305 = vpack.c.b16 %v291, %v290
    %v306 = vpack.c.b16 %v293, %v292
    %v307 = vpack.c.b16 %v295, %v294
    %v308 = vpack.c.b16 %v297, %v296
    %v309 = vpack.c.b16 %v299, %v298
    %v310 = vpack.c.b16 %v301, %v300
    %v311 = vpack.c.b16 %v303, %v302
    %320 = vmatprep.subr.bf16.mxu0 0
    %321 = vmatpush1.bf16.msra.mxu0 %v304
    %322 = vmatprep.subr.bf16.mxu0 0
    %323 = vmatpush1.bf16.msra.mxu0 %v305
    %324 = vmatprep.subr.bf16.mxu0 0
    %325 = vmatpush1.bf16.msra.mxu0 %v306
    %326 = vmatprep.subr.bf16.mxu0 0
    %327 = vmatpush1.bf16.msra.mxu0 %v307
    %328 = vmatprep.subr.bf16.mxu0 0
    %329 = vmatpush1.bf16.msra.mxu0 %v308
    %330 = vmatprep.subr.bf16.mxu0 0
    %331 = vmatpush1.bf16.msra.mxu0 %v309
    %332 = vmatprep.subr.bf16.mxu0 0
    %333 = vmatpush1.bf16.msra.mxu0 %v310
    %334 = vmatprep.subr.bf16.mxu0 0
    %335 = vmatpush1.bf16.msra.mxu0 %v311
    %336 = vmatprep.subr.bf16.mxu0 0
    %337 = vmatpush1.bf16.msra.mxu0 0
    %338 = vmatprep.subr.bf16.mxu0 0
    %339 = vmatpush1.bf16.msra.mxu0 0
    %340 = vmatprep.subr.bf16.mxu0 0
    %341 = vmatpush1.bf16.msra.mxu0 0
    %342 = vmatprep.subr.bf16.mxu0 0
    %343 = vmatpush1.bf16.msra.mxu0 0
    %344 = vmatprep.subr.bf16.mxu0 0
    %345 = vmatpush1.bf16.msra.mxu0 0
    %346 = vmatprep.subr.bf16.mxu0 0
    %347 = vmatpush1.bf16.msra.mxu0 0
    %348 = vmatprep.subr.bf16.mxu0 0
    %349 = vmatpush1.bf16.msra.mxu0 0
    %350 = vmatprep.subr.bf16.mxu0 0
    %351 = vmatpush1.bf16.msra.mxu0 0
    %352 = vmatprep.mubr.bf16.mxu0 0
    %353 = vmatmul.mubr.bf16.gmra.mrb[0].mxu0 %v248
    %v354 = vpop.f32.mrb[0].mxu0
    %v355 = vadd.f32 %v270, %v354
    %v356 = vpop.f32.mrb[0].mxu0
    %v357 = vpop.f32.mrb[0].mxu0
    %v358 = vpop.f32.mrb[0].mxu0
    %359 = vdwg.mxu0
    %v360 = vmul.f32 %v355, 0.5
    %v361 = vtanh.pop %v360
    %v362 = vadd.f32 %v361, 1.0
    %v363 = vmul.f32 %v362, 0.5
    %v364 = vpack.c.bf16 %v363, %v363
    %v365 = vld [vmem:[%s7] sm:$0xf]
    %v366 = vld [vmem:[%s7 + $0x4] sm:$0xf]
    %v367 = vld [vmem:[%s7 + $0x8] sm:$0xf]
    %v368 = vld [vmem:[%s7 + $0xc] sm:$0xf]
    %v369 = vld [vmem:[%s7 + $0x10] sm:$0xf]
    %v370 = vld [vmem:[%s7 + $0x14] sm:$0xf]
    %v371 = vld [vmem:[%s7 + $0x18] sm:$0xf]
    %v372 = vld [vmem:[%s7 + $0x1c] sm:$0xf]
    %v373 = vld [vmem:[%s7 + $0x20] sm:$0xf]
    %v374 = vld [vmem:[%s7 + $0x24] sm:$0xf]
    %v375 = vld [vmem:[%s7 + $0x28] sm:$0xf]
    %v376 = vld [vmem:[%s7 + $0x2c] sm:$0xf]
    %v377 = vld [vmem:[%s7 + $0x30] sm:$0xf]
    %v378 = vld [vmem:[%s7 + $0x34] sm:$0xf]
    %v379 = vld [vmem:[%s7 + $0x38] sm:$0xf]
    %v380 = vld [vmem:[%s7 + $0x3c] sm:$0xf]
    %v381 = vld [vmem:[%s8] sm:$0x1]
    %v383 = vlaneseq
    %v384 = vshrl.u32 %v383, 7
    %v385 = vsub.s32 0, %v384
    %v386 = vrot.slane %v381, %v385
    %v404 = vunpack.c.l.b16 %v365
    %v405 = vunpack.c.l.b16 %v366
    %v406 = vunpack.c.l.b16 %v367
    %v407 = vunpack.c.l.b16 %v368
    %v408 = vunpack.c.l.b16 %v369
    %v409 = vunpack.c.l.b16 %v370
    %v410 = vunpack.c.l.b16 %v371
    %v411 = vunpack.c.l.b16 %v372
    %v412 = vunpack.c.l.b16 %v373
    %v413 = vunpack.c.l.b16 %v374
    %v414 = vunpack.c.l.b16 %v375
    %v415 = vunpack.c.l.b16 %v376
    %v416 = vunpack.c.l.b16 %v377
    %v417 = vunpack.c.l.b16 %v378
    %v418 = vunpack.c.l.b16 %v379
    %v419 = vunpack.c.l.b16 %v380
    %v420 = vpack.c.b16 %v405, %v404
    %v421 = vpack.c.b16 %v407, %v406
    %v422 = vpack.c.b16 %v409, %v408
    %v423 = vpack.c.b16 %v411, %v410
    %v424 = vpack.c.b16 %v413, %v412
    %v425 = vpack.c.b16 %v415, %v414
    %v426 = vpack.c.b16 %v417, %v416
    %v427 = vpack.c.b16 %v419, %v418
    %436 = vmatprep.subr.bf16.mxu0 0
    %437 = vmatpush1.bf16.msra.mxu0 %v420
    %438 = vmatprep.subr.bf16.mxu0 0
    %439 = vmatpush1.bf16.msra.mxu0 %v421
    %440 = vmatprep.subr.bf16.mxu0 0
    %441 = vmatpush1.bf16.msra.mxu0 %v422
    %442 = vmatprep.subr.bf16.mxu0 0
    %443 = vmatpush1.bf16.msra.mxu0 %v423
    %444 = vmatprep.subr.bf16.mxu0 0
    %445 = vmatpush1.bf16.msra.mxu0 %v424
    %446 = vmatprep.subr.bf16.mxu0 0
    %447 = vmatpush1.bf16.msra.mxu0 %v425
    %448 = vmatprep.subr.bf16.mxu0 0
    %449 = vmatpush1.bf16.msra.mxu0 %v426
    %450 = vmatprep.subr.bf16.mxu0 0
    %451 = vmatpush1.bf16.msra.mxu0 %v427
    %452 = vmatprep.subr.bf16.mxu0 0
    %453 = vmatpush1.bf16.msra.mxu0 0
    %454 = vmatprep.subr.bf16.mxu0 0
    %455 = vmatpush1.bf16.msra.mxu0 0
    %456 = vmatprep.subr.bf16.mxu0 0
    %457 = vmatpush1.bf16.msra.mxu0 0
    %458 = vmatprep.subr.bf16.mxu0 0
    %459 = vmatpush1.bf16.msra.mxu0 0
    %460 = vmatprep.subr.bf16.mxu0 0
    %461 = vmatpush1.bf16.msra.mxu0 0
    %462 = vmatprep.subr.bf16.mxu0 0
    %463 = vmatpush1.bf16.msra.mxu0 0
    %464 = vmatprep.subr.bf16.mxu0 0
    %465 = vmatpush1.bf16.msra.mxu0 0
    %466 = vmatprep.subr.bf16.mxu0 0
    %467 = vmatpush1.bf16.msra.mxu0 0
    %468 = vmatprep.mubr.bf16.mxu0 0
    %469 = vmatmul.mubr.bf16.gmra.mrb[0].mxu0 %v364
    %v470 = vpop.f32.mrb[0].mxu0
    %v471 = vadd.f32 %v386, %v470
    %v472 = vpop.f32.mrb[0].mxu0
    %v473 = vpop.f32.mrb[0].mxu0
    %v474 = vpop.f32.mrb[0].mxu0
    %475 = vdwg.mxu0
    %vm476 = vcmask 261120
    %v477 = vsel %vm476, %v471, -inf
    %478 = vmax.xlane.f32.xlu0 %v477
    %v479 = vpop.xlane.xlu0 %478
    %v480 = vsub.f32 %v471, %v479
    %v481 = vmul.f32 %v480, 1.442695
    %v482 = vpow.pop %v481
    %v483 = vsel %vm476, %v482, 0.0
    %484 = vadd.xlane.f32.xlu0 %v483
    %v485 = vpop.xlane.xlu0 %484
    %v486 = vrcp.pop %v485
    %v487 = vmul.f32 %v482, %v486
    %488 = vst.msk [vmem:[#allocation7] sm:$0xff] %vm476, %v487
    // Predicated region
    $region46: #{tpu_custom_call.1} parent=1 // pred_check
      _
    $region47: #{tpu_custom_call.1} parent=1 // pred_check_branch
      %490 = sbr.rel (0) target = $region49
    $region48: #{tpu_custom_call.1} parent=1 // pred_region
      %s492 = ssub.s32 128, 128
      %493 = vsyncadd [#allocation4], %s492
      %s495 = sshll.u32 [#allocation7], 4
      %s496 = int_to_ptr.vmem [resolvable:$true] %s495
      %498 = dma.vmem_to_hbm [thread:$0]  %s496, 128, %s9, [#allocation4]
    $region49: #{tpu_custom_call.1} parent=1 // pred_fallthru
      _
    // Predicated region
    $region50: #{tpu_custom_call.1} parent=1 // pred_check
      _
    $region51: #{tpu_custom_call.1} parent=1 // pred_check_branch
      %500 = sbr.rel (0) target = $region53
    $region52: #{tpu_custom_call.1} parent=1 // pred_region
      %501 = dma.done [#allocation4], 128
    $region53: #{tpu_custom_call.1} parent=1 // pred_fallthru
      _
    %502 = vsyncpa [#allocation3], 1
    %503 = vsyncpa [#allocation6], 1
    %504 = vsyncpa [#allocation4], 1

</llo_original>
